<compile_context>
chip_gen: v5e
topology: v5e:2x2
jax: 0.10.0
libtpu: 0.0.40
codegen_flags: <defaults>
</compile_context>

<pallas_src>
import functools
import numpy as np
import jax
import jax.numpy as jnp
from jax.experimental import pallas as pl
from jax.experimental.pallas import tpu as pltpu

_NEG = -1e30  # additive mask for non-edges


# ----------------------------------------------------------------------------- helpers

def _elu(x):
    return jnp.where(x > 0.0, x, jnp.exp(x) - 1.0)       # F.elu, alpha=1


def _fast_recip(x):
    # EUP approximate reciprocal (free slot) + one Newton step -> ~f32 accuracy.
    r = pl.reciprocal(x, approx=True)
    return r * (2.0 - x * r)


def _gat_layer(x, w, att_comb, bias, negm, heads, cst):
    """One dense GATConv layer with lane-packed heads.  Returns [N, heads*f_out].

    x:        [N, F_in]
    w:        [F_in, H*F_out]
    att_comb: [H*F_out, 2H]  (cols 0..H-1: block-diag att_src, cols H..2H-1: att_dst)
    bias:     [N, H*F_out]   (pre-broadcast)
    negm:     [N, H*N]       0 on edges, -1e30 off edges (lane-packed per head)
    cst:      host-precomputed 0/1 matrices (see pack_gat_inputs)
    """
    xp = jnp.dot(x, w, preferred_element_type=jnp.float32)             # [N, H*F]
    asd = jnp.dot(xp, att_comb, preferred_element_type=jnp.float32)    # [N, 2H]
    a_s = asd[:, :heads]                                               # [N, H]
    a_d = asd[:, heads:2 * heads]                                      # [N, H]

    if heads == 1:
        # e[d, s] = a_d[d] + a_s[s]; rows of a_s_exp are a_s^T (no in-kernel transpose).
        a_s_exp = jnp.dot(cst["ones_nn"], a_s * cst["eye_n"],
                          preferred_element_type=jnp.float32)          # [N, N]
        e = a_d + a_s_exp
    else:
        # Lane-packed e[d, h*N+s] = a_d[d,h] + a_s[s,h] on one [N, H*N] (=16x128) tile.
        a_d_exp = jnp.dot(a_d, cst["ed"], preferred_element_type=jnp.float32)
        a_s_scat = jnp.dot(a_s, cst["ed"], preferred_element_type=jnp.float32) * cst["d"]
        a_s_exp = jnp.dot(cst["ones_nn"], a_s_scat, preferred_element_type=jnp.float32)
        e = a_d_exp + a_s_exp

    e = jnp.maximum(e, 0.2 * e) + negm                 # LeakyReLU(0.2), then edge mask
    # One per-row shift (shared by all head segments): exact for each head's softmax,
    # keeps exp overflow-safe, 1 lane reduction instead of H.
    e = e - jnp.max(e, axis=1, keepdims=True)
    p = jnp.exp(e)                                     # masked entries underflow to 0

    if heads == 1:
        att = p * _fast_recip(jnp.sum(p, axis=1, keepdims=True))
        xp_bd = xp
    else:
        ssum = jnp.dot(p, cst["segsum"], preferred_element_type=jnp.float32)   # [N, H]
        att = p * jnp.dot(_fast_recip(ssum), cst["ed"],
                          preferred_element_type=jnp.float32)                  # [N, H*N]
        # Block-diagonal xp: Xp_bd[h*N+s, h*F+f] = xp[s, h*F+f]
        xp_bd = jnp.dot(cst["tile"], xp, preferred_element_type=jnp.float32) * cst["bd"]

    return jnp.dot(att, xp_bd, preferred_element_type=jnp.float32) + bias


# ----------------------------------------------------------------------------- kernel

def _gat_fused_kernel(x_ref, c128_ref, segsum1_ref, c64_ref, c16_ref, c4_ref, out_ref,
                      *, n, heads, f_in, f1, f2):
    hn, hf1 = heads * n, heads * f1

    # --- unpack host-precomputed constant/parameter blobs (static row slices) ---
    c128 = c128_ref[...]                       # [H + 2N, H*N]
    ed1 = c128[0:heads, :]                     # head-expansion       [H,  H*N]
    d1 = c128[heads:heads + n, :]              # src scatter-diag     [N,  H*N]
    negm1 = c128[heads + n:heads + 2 * n, :]   # lane-packed edge mask[N,  H*N]

    c64 = c64_ref[...]                         # [f_in + H*N + N, H*F1]
    w1 = c64[0:f_in, :]
    bd1 = c64[f_in:f_in + hn, :]               # block-diag 0/1 mask  [H*N, H*F1]
    b1 = c64[f_in + hn:f_in + hn + n, :]       # bias (pre-broadcast) [N, H*F1]

    c16 = c16_ref[...]                         # [H*F1 + H*N, max(2H, N)]
    att1 = c16[0:hf1, 0:2 * heads]             # combined src|dst att [H*F1, 2H]
    tile1 = c16[hf1:hf1 + hn, 0:n]             # row-tile matrix      [H*N, N]

    c4 = c4_ref[...]                           # [H*F1 + F2 + N, F2]
    w2 = c4[0:hf1, :]
    att2 = c4[hf1:hf1 + f2, 0:2]               # [F2, 2]
    b2 = c4[hf1 + f2:hf1 + f2 + n, :]          # [N, F2]

    ones_nn = jnp.ones((n, n), jnp.float32)    # splat constants (cheap)
    eye_n = tile1[0:n, :]                      # first N rows of tile matrix = identity
    negm2 = negm1[:, 0:n]                      # base [N, N] edge mask

    cst1 = dict(ed=ed1, d=d1, segsum=segsum1_ref[...], tile=tile1, bd=bd1, ones_nn=ones_nn)
    cst2 = dict(ones_nn=ones_nn, eye_n=eye_n)

    # --- fused forward: conv1 -> ELU -> conv2 -> log_softmax ---
    h1 = _gat_layer(x_ref[...], w1, att1, b1, negm1, heads, cst1)
    h1 = _elu(h1)
    h2 = _gat_layer(h1, w2, att2, b2, negm2, 1, cst2)

    z = h2 - jnp.max(h2, axis=1, keepdims=True)          # log_softmax(dim=1)
    lsm = z - jnp.log(jnp.sum(jnp.exp(z), axis=1, keepdims=True))
    out_ref[...] = jnp.concatenate([h2, lsm], axis=1)    # single lane-fused store


# ----------------------------------------------------------------------------- packing

def pack_gat_inputs(adj, w1, att_src1, att_dst1, b1, w2, att_src2, att_dst2, b2,
                    *, heads, f1, f2):
    """Host-side (numpy) packing of weights + all constant matrices into 5 blobs."""
    adj = np.asarray(adj, np.float32)
    n = adj.shape[0]
    f_in = np.asarray(w1).shape[0]
    hn, hf1 = heads * n, heads * f1

    # lane-128 group: head expansion, src scatter-diag, lane-packed edge mask
    ed1 = np.kron(np.eye(heads, dtype=np.float32), np.ones((1, n), np.float32))      # [H, H*N]
    d1 = np.tile(np.eye(n, dtype=np.float32), (1, heads))                            # [N, H*N]
    negm = np.where(adj > 0, 0.0, _NEG).astype(np.float32)                           # [N, N]
    negm1 = np.tile(negm, (1, heads))                                                # [N, H*N]
    c128 = np.concatenate([ed1, d1, negm1], axis=0)

    segsum1 = np.kron(np.eye(heads, dtype=np.float32), np.ones((n, 1), np.float32))  # [H*N, H]

    # lane-(H*F1) group: W1, block-diag mask, broadcast bias
    bd1 = np.kron(np.eye(heads, dtype=np.float32), np.ones((n, f1), np.float32))     # [H*N, H*F1]
    b1_full = np.tile(np.asarray(b1, np.float32).reshape(1, hf1), (n, 1))
    c64 = np.concatenate([np.asarray(w1, np.float32), bd1, b1_full], axis=0)

    # combined att matrix (src | dst block-diagonals) and row-tile matrix
    def blockdiag(att):   # [H, F1] -> [H*F1, H]
        m = np.zeros((hf1, heads), np.float32)
        for h in range(heads):
            m[h * f1:(h + 1) * f1, h] = np.asarray(att, np.float32)[h]
        return m
    att1_comb = np.concatenate([blockdiag(att_src1), blockdiag(att_dst1)], axis=1)   # [H*F1, 2H]
    tile1 = np.tile(np.eye(n, dtype=np.float32), (heads, 1))                         # [H*N, N]
    w16 = max(2 * heads, n)
    att1_p = np.zeros((hf1, w16), np.float32); att1_p[:, :2 * heads] = att1_comb
    tile1_p = np.zeros((hn, w16), np.float32); tile1_p[:, :n] = tile1
    c16 = np.concatenate([att1_p, tile1_p], axis=0)

    # layer-2 params (heads=1): W2, [att_src2 | att_dst2] columns, broadcast bias
    att2p = np.zeros((f2, f2), np.float32)                # requires f2 >= 2
    att2p[:, 0] = np.asarray(att_src2, np.float32).reshape(-1)
    att2p[:, 1] = np.asarray(att_dst2, np.float32).reshape(-1)
    b2_full = np.tile(np.asarray(b2, np.float32).reshape(1, f2), (n, 1))
    c4 = np.concatenate([np.asarray(w2, np.float32), att2p, b2_full], axis=0)

    blobs = dict(c128=c128, segsum1=segsum1, c64=c64, c16=c16, c4=c4)
    return {k: jnp.asarray(v) for k, v in blobs.items()}, dict(n=n, f_in=f_in)


# ----------------------------------------------------------------------------- wrapper

def gat_forward(x, blobs, *, heads, dim_h, dim_out):
    """GAT.forward (eval mode): returns (h2, log_softmax(h2, dim=1))."""
    n, f_in = x.shape
    kernel = functools.partial(_gat_fused_kernel, n=n, heads=heads,
                               f_in=f_in, f1=dim_h, f2=dim_out)
    vmem = lambda: pl.BlockSpec(memory_space=pltpu.MemorySpace.VMEM)
    out = pl.pallas_call(
        kernel,
        out_shape=jax.ShapeDtypeStruct((n, 2 * dim_out), jnp.float32),
        in_specs=[vmem() for _ in range(6)],
        out_specs=vmem(),
    )(x, blobs["c128"], blobs["segsum1"], blobs["c64"], blobs["c16"], blobs["c4"])
    return out[:, :dim_out], out[:, dim_out:]


# ----------------------------------------------------------------------------- main

if __name__ == "__main__":
    N, DIM_IN, DIM_H, DIM_OUT, HEADS = 16, 8, 8, 4, 8

    key = jax.random.PRNGKey(0)
    ks = jax.random.split(key, 8)

    x = jax.random.normal(ks[0], (N, DIM_IN), jnp.float32)

    # deterministic graph: bidirectional ring; edge_index[0]=src, edge_index[1]=dst
    src = jnp.arange(N)
    dst = (src + 1) % N
    edge_index = jnp.stack([jnp.concatenate([src, dst]), jnp.concatenate([dst, src])])
    adj = jnp.zeros((N, N), jnp.float32).at[edge_index[1], edge_index[0]].set(1.0)
    adj = adj.at[jnp.arange(N), jnp.arange(N)].set(1.0)   # add_self_loops=True

    def glorot(k, shape):
        lim = (6.0 / (shape[0] + shape[-1])) ** 0.5
        return jax.random.uniform(k, shape, jnp.float32, -lim, lim)

    # GATConv(dim_in, dim_h, heads=8): W [dim_in, H*dim_h], att_src/dst [H, dim_h], bias
    w1 = glorot(ks[1], (DIM_IN, HEADS * DIM_H))
    att_src1 = glorot(ks[2], (HEADS, DIM_H))
    att_dst1 = glorot(ks[3], (HEADS, DIM_H))
    b1 = jnp.zeros((1, HEADS * DIM_H), jnp.float32)
    # GATConv(dim_h*heads, dim_out, heads=1)
    w2 = glorot(ks[4], (HEADS * DIM_H, DIM_OUT))
    att_src2 = glorot(ks[5], (1, DIM_OUT))
    att_dst2 = glorot(ks[6], (1, DIM_OUT))
    b2 = jnp.zeros((1, DIM_OUT), jnp.float32)

    blobs, _ = pack_gat_inputs(adj, w1, att_src1, att_dst1, b1,
                               w2, att_src2, att_dst2, b2,
                               heads=HEADS, f1=DIM_H, f2=DIM_OUT)

    h2, lsm = gat_forward(x, blobs, heads=HEADS, dim_h=DIM_H, dim_out=DIM_OUT)
    jax.block_until_ready((h2, lsm))

    # pure-JAX reference (same GATConv math, independent formulation)
    def ref_conv(xin, w, a_s, a_d, b, heads, f_out):
        xp = xin @ w
        xp3 = xp.reshape(N, heads, f_out)
        als = jnp.einsum("nhf,hf->nh", xp3, a_s)
        ald = jnp.einsum("nhf,hf->nh", xp3, a_d)
        e = ald[:, None, :] + als[None, :, :]            # [dst, src, h]
        e = jnp.where(e > 0, e, 0.2 * e)
        e = jnp.where(adj[:, :, None] > 0, e, -jnp.inf)
        att = jax.nn.softmax(e, axis=1)
        return jnp.einsum("dsh,shf->dhf", att, xp3).reshape(N, heads * f_out) + b

    r1 = ref_conv(x, w1, att_src1, att_dst1, b1, HEADS, DIM_H)
    r2 = ref_conv(jnp.where(r1 > 0, r1, jnp.exp(r1) - 1.0), w2, att_src2, att_dst2, b2, 1, DIM_OUT)
    rlsm = jax.nn.log_softmax(r2, axis=1)

    # slightly relaxed vs 1e-4 to leave margin for the EUP approximate-reciprocal path
    np.testing.assert_allclose(np.asarray(h2), np.asarray(r2), rtol=5e-4, atol=5e-4)
    np.testing.assert_allclose(np.asarray(lsm), np.asarray(rlsm), rtol=5e-4, atol=5e-4)
    print("KERNEL_OK")
</pallas_src>

<mosaic_0001>
module attributes {stable_mosaic.version = 11 : i64} {
  func.func @_gat_fused_kernel(%arg0: memref<16x8xf32, #tpu.memory_space<vmem>>, %arg1: memref<40x128xf32, #tpu.memory_space<vmem>>, %arg2: memref<128x8xf32, #tpu.memory_space<vmem>>, %arg3: memref<152x64xf32, #tpu.memory_space<vmem>>, %arg4: memref<192x16xf32, #tpu.memory_space<vmem>>, %arg5: memref<84x4xf32, #tpu.memory_space<vmem>>, %arg6: memref<16x8xf32, #tpu.memory_space<vmem>>) attributes {dimension_semantics = [], scalar_prefetch = 0 : i64, scratch_operands = 0 : i64, tpu.core_type = #tpu.core_type<tc>} {
    %c0 = arith.constant 0 : index
    %c0_0 = arith.constant 0 : index
    %0 = vector.load %arg1[%c0, %c0_0] : memref<40x128xf32, #tpu.memory_space<vmem>>, vector<40x128xf32>
    %1 = vector.extract_strided_slice %0 {offsets = [0, 0], sizes = [8, 128], strides = [1, 1]} : vector<40x128xf32> to vector<8x128xf32>
    %2 = vector.extract_strided_slice %0 {offsets = [8, 0], sizes = [16, 128], strides = [1, 1]} : vector<40x128xf32> to vector<16x128xf32>
    %3 = vector.extract_strided_slice %0 {offsets = [24, 0], sizes = [16, 128], strides = [1, 1]} : vector<40x128xf32> to vector<16x128xf32>
    %c0_1 = arith.constant 0 : index
    %c0_2 = arith.constant 0 : index
    %4 = vector.load %arg3[%c0_1, %c0_2] : memref<152x64xf32, #tpu.memory_space<vmem>>, vector<152x64xf32>
    %5 = vector.extract_strided_slice %4 {offsets = [0, 0], sizes = [8, 64], strides = [1, 1]} : vector<152x64xf32> to vector<8x64xf32>
    %6 = vector.extract_strided_slice %4 {offsets = [8, 0], sizes = [128, 64], strides = [1, 1]} : vector<152x64xf32> to vector<128x64xf32>
    %7 = vector.extract_strided_slice %4 {offsets = [136, 0], sizes = [16, 64], strides = [1, 1]} : vector<152x64xf32> to vector<16x64xf32>
    %c0_3 = arith.constant 0 : index
    %c0_4 = arith.constant 0 : index
    %8 = vector.load %arg4[%c0_3, %c0_4] : memref<192x16xf32, #tpu.memory_space<vmem>>, vector<192x16xf32>
    %9 = vector.extract_strided_slice %8 {offsets = [0, 0], sizes = [64, 16], strides = [1, 1]} : vector<192x16xf32> to vector<64x16xf32>
    %10 = vector.extract_strided_slice %8 {offsets = [64, 0], sizes = [128, 16], strides = [1, 1]} : vector<192x16xf32> to vector<128x16xf32>
    %c0_5 = arith.constant 0 : index
    %c0_6 = arith.constant 0 : index
    %11 = vector.load %arg5[%c0_5, %c0_6] : memref<84x4xf32, #tpu.memory_space<vmem>>, vector<84x4xf32>
    %12 = vector.extract_strided_slice %11 {offsets = [0, 0], sizes = [64, 4], strides = [1, 1]} : vector<84x4xf32> to vector<64x4xf32>
    %13 = vector.extract_strided_slice %11 {offsets = [64, 0], sizes = [4, 2], strides = [1, 1]} : vector<84x4xf32> to vector<4x2xf32>
    %14 = vector.extract_strided_slice %11 {offsets = [68, 0], sizes = [16, 4], strides = [1, 1]} : vector<84x4xf32> to vector<16x4xf32>
    %cst = arith.constant 1.000000e+00 : f32
    %15 = vector.broadcast %cst : f32 to vector<16x16xf32>
    %16 = vector.extract_strided_slice %10 {offsets = [0, 0], sizes = [16, 16], strides = [1, 1]} : vector<128x16xf32> to vector<16x16xf32>
    %17 = vector.extract_strided_slice %3 {offsets = [0, 0], sizes = [16, 16], strides = [1, 1]} : vector<16x128xf32> to vector<16x16xf32>
    %c0_7 = arith.constant 0 : index
    %c0_8 = arith.constant 0 : index
    %18 = vector.load %arg2[%c0_7, %c0_8] : memref<128x8xf32, #tpu.memory_space<vmem>>, vector<128x8xf32>
    %c0_9 = arith.constant 0 : index
    %c0_10 = arith.constant 0 : index
    %19 = vector.load %arg0[%c0_9, %c0_10] : memref<16x8xf32, #tpu.memory_space<vmem>>, vector<16x8xf32>
    %cst_11 = arith.constant dense<0.000000e+00> : vector<16x64xf32>
    %20 = tpu.matmul %19, %5, %cst_11 {dimension_numbers = #tpu.dot_dimension_numbers<[1], [0], [0], [1], [0, 0, 1, 1], [], []>} : vector<16x8xf32>, vector<8x64xf32>, vector<16x64xf32> -> vector<16x64xf32>
    %cst_12 = arith.constant dense<0.000000e+00> : vector<16x16xf32>
    %21 = tpu.matmul %20, %9, %cst_12 {dimension_numbers = #tpu.dot_dimension_numbers<[1], [0], [0], [1], [0, 0, 1, 1], [], []>} : vector<16x64xf32>, vector<64x16xf32>, vector<16x16xf32> -> vector<16x16xf32>
    %22 = vector.extract_strided_slice %21 {offsets = [0, 0], sizes = [16, 8], strides = [1, 1]} : vector<16x16xf32> to vector<16x8xf32>
    %23 = vector.extract_strided_slice %21 {offsets = [0, 8], sizes = [16, 8], strides = [1, 1]} : vector<16x16xf32> to vector<16x8xf32>
    %cst_13 = arith.constant dense<0.000000e+00> : vector<16x128xf32>
    %24 = tpu.matmul %23, %1, %cst_13 {dimension_numbers = #tpu.dot_dimension_numbers<[1], [0], [0], [1], [0, 0, 1, 1], [], []>} : vector<16x8xf32>, vector<8x128xf32>, vector<16x128xf32> -> vector<16x128xf32>
    %cst_14 = arith.constant dense<0.000000e+00> : vector<16x128xf32>
    %25 = tpu.matmul %22, %1, %cst_14 {dimension_numbers = #tpu.dot_dimension_numbers<[1], [0], [0], [1], [0, 0, 1, 1], [], []>} : vector<16x8xf32>, vector<8x128xf32>, vector<16x128xf32> -> vector<16x128xf32>
    %26 = arith.mulf %25, %2 : vector<16x128xf32>
    %cst_15 = arith.constant dense<0.000000e+00> : vector<16x128xf32>
    %27 = tpu.matmul %15, %26, %cst_15 {dimension_numbers = #tpu.dot_dimension_numbers<[1], [0], [0], [1], [0, 0, 1, 1], [], []>} : vector<16x16xf32>, vector<16x128xf32>, vector<16x128xf32> -> vector<16x128xf32>
    %28 = arith.addf %24, %27 : vector<16x128xf32>
    %cst_16 = arith.constant 2.000000e-01 : f32
    %29 = vector.broadcast %cst_16 : f32 to vector<16x128xf32>
    %30 = arith.mulf %29, %28 : vector<16x128xf32>
    %31 = arith.maximumf %28, %30 : vector<16x128xf32>
    %32 = arith.addf %31, %3 : vector<16x128xf32>
    %cst_17 = arith.constant dense<0xFF800000> : vector<16xf32>
    %33 = vector.multi_reduction <maximumf>, %32, %cst_17 [1] : vector<16x128xf32> to vector<16xf32>
    %34 = vector.shape_cast %33 : vector<16xf32> to vector<16x1xf32>
    %35 = vector.broadcast %34 : vector<16x1xf32> to vector<16x128xf32>
    %36 = arith.subf %32, %35 : vector<16x128xf32>
    %37 = math.exp %36 : vector<16x128xf32>
    %cst_18 = arith.constant dense<0.000000e+00> : vector<16x8xf32>
    %38 = tpu.matmul %37, %18, %cst_18 {dimension_numbers = #tpu.dot_dimension_numbers<[1], [0], [0], [1], [0, 0, 1, 1], [], []>} : vector<16x128xf32>, vector<128x8xf32>, vector<16x8xf32> -> vector<16x8xf32>
    %39 = tpu.reciprocal %38 {approx = true} : vector<16x8xf32> -> vector<16x8xf32>
    %40 = arith.mulf %38, %39 : vector<16x8xf32>
    %cst_19 = arith.constant 2.000000e+00 : f32
    %41 = vector.broadcast %cst_19 : f32 to vector<16x8xf32>
    %42 = arith.subf %41, %40 : vector<16x8xf32>
    %43 = arith.mulf %39, %42 : vector<16x8xf32>
    %cst_20 = arith.constant dense<0.000000e+00> : vector<16x128xf32>
    %44 = tpu.matmul %43, %1, %cst_20 {dimension_numbers = #tpu.dot_dimension_numbers<[1], [0], [0], [1], [0, 0, 1, 1], [], []>} : vector<16x8xf32>, vector<8x128xf32>, vector<16x128xf32> -> vector<16x128xf32>
    %45 = arith.mulf %37, %44 : vector<16x128xf32>
    %cst_21 = arith.constant dense<0.000000e+00> : vector<128x64xf32>
    %46 = tpu.matmul %10, %20, %cst_21 {dimension_numbers = #tpu.dot_dimension_numbers<[1], [0], [0], [1], [0, 0, 1, 1], [], []>} : vector<128x16xf32>, vector<16x64xf32>, vector<128x64xf32> -> vector<128x64xf32>
    %47 = arith.mulf %46, %6 : vector<128x64xf32>
    %cst_22 = arith.constant dense<0.000000e+00> : vector<16x64xf32>
    %48 = tpu.matmul %45, %47, %cst_22 {dimension_numbers = #tpu.dot_dimension_numbers<[1], [0], [0], [1], [0, 0, 1, 1], [], []>} : vector<16x128xf32>, vector<128x64xf32>, vector<16x64xf32> -> vector<16x64xf32>
    %49 = arith.addf %48, %7 : vector<16x64xf32>
    %cst_23 = arith.constant 0.000000e+00 : f32
    %50 = vector.broadcast %cst_23 : f32 to vector<16x64xf32>
    %51 = arith.cmpf ogt, %49, %50 : vector<16x64xf32>
    %52 = math.exp %49 : vector<16x64xf32>
    %cst_24 = arith.constant 1.000000e+00 : f32
    %53 = vector.broadcast %cst_24 : f32 to vector<16x64xf32>
    %54 = arith.subf %52, %53 : vector<16x64xf32>
    %55 = arith.select %51, %49, %54 : vector<16x64xi1>, vector<16x64xf32>
    %cst_25 = arith.constant dense<0.000000e+00> : vector<16x4xf32>
    %56 = tpu.matmul %55, %12, %cst_25 {dimension_numbers = #tpu.dot_dimension_numbers<[1], [0], [0], [1], [0, 0, 1, 1], [], []>} : vector<16x64xf32>, vector<64x4xf32>, vector<16x4xf32> -> vector<16x4xf32>
    %cst_26 = arith.constant dense<0.000000e+00> : vector<16x2xf32>
    %57 = tpu.matmul %56, %13, %cst_26 {dimension_numbers = #tpu.dot_dimension_numbers<[1], [0], [0], [1], [0, 0, 1, 1], [], []>} : vector<16x4xf32>, vector<4x2xf32>, vector<16x2xf32> -> vector<16x2xf32>
    %58 = vector.extract_strided_slice %57 {offsets = [0, 0], sizes = [16, 1], strides = [1, 1]} : vector<16x2xf32> to vector<16x1xf32>
    %59 = vector.extract_strided_slice %57 {offsets = [0, 1], sizes = [16, 1], strides = [1, 1]} : vector<16x2xf32> to vector<16x1xf32>
    %60 = vector.broadcast %58 : vector<16x1xf32> to vector<16x16xf32>
    %61 = arith.mulf %60, %16 : vector<16x16xf32>
    %cst_27 = arith.constant dense<0.000000e+00> : vector<16x16xf32>
    %62 = tpu.matmul %15, %61, %cst_27 {dimension_numbers = #tpu.dot_dimension_numbers<[1], [0], [0], [1], [0, 0, 1, 1], [], []>} : vector<16x16xf32>, vector<16x16xf32>, vector<16x16xf32> -> vector<16x16xf32>
    %63 = vector.broadcast %59 : vector<16x1xf32> to vector<16x16xf32>
    %64 = arith.addf %63, %62 : vector<16x16xf32>
    %cst_28 = arith.constant 2.000000e-01 : f32
    %65 = vector.broadcast %cst_28 : f32 to vector<16x16xf32>
    %66 = arith.mulf %65, %64 : vector<16x16xf32>
    %67 = arith.maximumf %64, %66 : vector<16x16xf32>
    %68 = arith.addf %67, %17 : vector<16x16xf32>
    %cst_29 = arith.constant dense<0xFF800000> : vector<16xf32>
    %69 = vector.multi_reduction <maximumf>, %68, %cst_29 [1] : vector<16x16xf32> to vector<16xf32>
    %70 = vector.shape_cast %69 : vector<16xf32> to vector<16x1xf32>
    %71 = vector.broadcast %70 : vector<16x1xf32> to vector<16x16xf32>
    %72 = arith.subf %68, %71 : vector<16x16xf32>
    %73 = math.exp %72 : vector<16x16xf32>
    %cst_30 = arith.constant dense<0.000000e+00> : vector<16xf32>
    %74 = vector.multi_reduction <add>, %73, %cst_30 [1] : vector<16x16xf32> to vector<16xf32>
    %75 = vector.shape_cast %74 : vector<16xf32> to vector<16x1xf32>
    %76 = tpu.reciprocal %75 {approx = true} : vector<16x1xf32> -> vector<16x1xf32>
    %77 = arith.mulf %75, %76 : vector<16x1xf32>
    %cst_31 = arith.constant 2.000000e+00 : f32
    %78 = vector.broadcast %cst_31 : f32 to vector<16x1xf32>
    %79 = arith.subf %78, %77 : vector<16x1xf32>
    %80 = arith.mulf %76, %79 : vector<16x1xf32>
    %81 = vector.broadcast %80 : vector<16x1xf32> to vector<16x16xf32>
    %82 = arith.mulf %73, %81 : vector<16x16xf32>
    %cst_32 = arith.constant dense<0.000000e+00> : vector<16x4xf32>
    %83 = tpu.matmul %82, %56, %cst_32 {dimension_numbers = #tpu.dot_dimension_numbers<[1], [0], [0], [1], [0, 0, 1, 1], [], []>} : vector<16x16xf32>, vector<16x4xf32>, vector<16x4xf32> -> vector<16x4xf32>
    %84 = arith.addf %83, %14 : vector<16x4xf32>
    %cst_33 = arith.constant dense<0xFF800000> : vector<16xf32>
    %85 = vector.multi_reduction <maximumf>, %84, %cst_33 [1] : vector<16x4xf32> to vector<16xf32>
    %86 = vector.shape_cast %85 : vector<16xf32> to vector<16x1xf32>
    %87 = vector.broadcast %86 : vector<16x1xf32> to vector<16x4xf32>
    %88 = arith.subf %84, %87 : vector<16x4xf32>
    %89 = math.exp %88 : vector<16x4xf32>
    %cst_34 = arith.constant dense<0.000000e+00> : vector<16xf32>
    %90 = vector.multi_reduction <add>, %89, %cst_34 [1] : vector<16x4xf32> to vector<16xf32>
    %91 = vector.shape_cast %90 : vector<16xf32> to vector<16x1xf32>
    %92 = math.log %91 : vector<16x1xf32>
    %93 = vector.broadcast %92 : vector<16x1xf32> to vector<16x4xf32>
    %94 = arith.subf %88, %93 : vector<16x4xf32>
    %95 = tpu.concatenate %84, %94 in 1 : vector<16x4xf32>, vector<16x4xf32> -> vector<16x8xf32>
    %c0_35 = arith.constant 0 : index
    %c0_36 = arith.constant 0 : index
    %96 = vector.load %arg6[%c0_35, %c0_36] : memref<16x8xf32, #tpu.memory_space<vmem>>, vector<16x8xf32>
    tpu.vector_store %arg6[%c0_35, %c0_36], %95 {strides = array<i32>} : memref<16x8xf32, #tpu.memory_space<vmem>>, vector<16x8xf32>,
    return
  }
}

</mosaic_0001>

<llo_original>
// kernel: tpu_custom_call.1
$region0: #{tpu_custom_call.1}
  #allocation0 [shape = 'u32[]', space=smem, size = 0x4, offset = 0x4, fixed_abs, tag = 'smem constant byte address 0x4 - core index']
  #allocation1 [shape = 'u32[72,128]{1,0:T(1,128)}', space=vmem, size = 0x9000, scoped, tag = 'internal scratch']
  %s0 = inlined_call_operand.vmem [shape: f32[16,8], index: 0, kind: input, shape index: {}]
  %s1 = inlined_call_operand.vmem [shape: f32[40,128], index: 1, kind: input, shape index: {}]
  %s2 = inlined_call_operand.vmem [shape: f32[128,8], index: 2, kind: input, shape index: {}]
  %s3 = inlined_call_operand.vmem [shape: f32[152,64], index: 3, kind: input, shape index: {}]
  %s4 = inlined_call_operand.vmem [shape: f32[192,16], index: 4, kind: input, shape index: {}]
  %s5 = inlined_call_operand.vmem [shape: f32[84,4], index: 5, kind: input, shape index: {}]
  %s6 = inlined_call_operand.vmem [shape: f32[16,8], index: 6, kind: output, shape index: {}]
  %s7 = sld [smem:[#allocation0]]
  $region34: #{tpu_custom_call.1} parent=0
    _
  %s9 = ssub.s32 1, %s7
  %s10 = scalar_select 0, %s9, %s7
  // Predicated region
  $region2: #{tpu_custom_call.1} parent=0 // pred_check
    _
  $region3: #{tpu_custom_call.1} parent=0 // pred_check_branch
    %12 = sbr.rel (0) target = $region5
  $region4: #{tpu_custom_call.1} parent=0 // pred_region
    _
  $region5: #{tpu_custom_call.1} parent=0 // pred_fallthru
    _
  // Predicated region
  $region6: #{tpu_custom_call.1} parent=0 // pred_check
    _
  $region7: #{tpu_custom_call.1} parent=0 // pred_check_branch
    %14 = sbr.rel (0) target = $region9
  $region8: #{tpu_custom_call.1} parent=0 // pred_region
    _
  $region9: #{tpu_custom_call.1} parent=0 // pred_fallthru
    _
  // Predicated region
  $region10: #{tpu_custom_call.1} parent=0 // pred_check
    _
  $region11: #{tpu_custom_call.1} parent=0 // pred_check_branch
    %16 = sbr.rel (0) target = $region13
  $region12: #{tpu_custom_call.1} parent=0 // pred_region
    _
  $region13: #{tpu_custom_call.1} parent=0 // pred_fallthru
    _
  // Predicated region
  $region14: #{tpu_custom_call.1} parent=0 // pred_check
    _
  $region15: #{tpu_custom_call.1} parent=0 // pred_check_branch
    %18 = sbr.rel (0) target = $region17
  $region16: #{tpu_custom_call.1} parent=0 // pred_region
    _
  $region17: #{tpu_custom_call.1} parent=0 // pred_fallthru
    _
  // Predicated region
  $region18: #{tpu_custom_call.1} parent=0 // pred_check
    _
  $region19: #{tpu_custom_call.1} parent=0 // pred_check_branch
    %20 = sbr.rel (0) target = $region21
  $region20: #{tpu_custom_call.1} parent=0 // pred_region
    _
  $region21: #{tpu_custom_call.1} parent=0 // pred_fallthru
    _
  // Predicated region
  $region22: #{tpu_custom_call.1} parent=0 // pred_check
    _
  $region23: #{tpu_custom_call.1} parent=0 // pred_check_branch
    %22 = sbr.rel (0) target = $region25
  $region24: #{tpu_custom_call.1} parent=0 // pred_region
    _
  $region25: #{tpu_custom_call.1} parent=0 // pred_fallthru
    _
  %v23 = vld [vmem:[%s1] sm:$0xff]
  %v24 = vld [vmem:[%s1 + $0x8] sm:$0xff]
  %v25 = vld [vmem:[%s1 + $0x10] sm:$0xff]
  %v26 = vld [vmem:[%s1 + $0x18] sm:$0xff]
  %v27 = vld [vmem:[%s1 + $0x20] sm:$0xff]
  %v28 = vld [vmem:[%s3] sm:$0xff]
  %v29 = vld [vmem:[%s3 + $0x8] sm:$0xff]
  %v30 = vld [vmem:[%s3 + $0x10] sm:$0xff]
  %v31 = vld [vmem:[%s3 + $0x18] sm:$0xff]
  %v32 = vld [vmem:[%s3 + $0x20] sm:$0xff]
  %v33 = vld [vmem:[%s3 + $0x28] sm:$0xff]
  %v34 = vld [vmem:[%s3 + $0x30] sm:$0xff]
  %v35 = vld [vmem:[%s3 + $0x38] sm:$0xff]
  %v36 = vld [vmem:[%s3 + $0x40] sm:$0xff]
  %v37 = vld [vmem:[%s3 + $0x48] sm:$0xff]
  %v38 = vld [vmem:[%s3 + $0x50] sm:$0xff]
  %v39 = vld [vmem:[%s3 + $0x58] sm:$0xff]
  %v40 = vld [vmem:[%s3 + $0x60] sm:$0xff]
  %v41 = vld [vmem:[%s3 + $0x68] sm:$0xff]
  %v42 = vld [vmem:[%s3 + $0x70] sm:$0xff]
  %v43 = vld [vmem:[%s3 + $0x78] sm:$0xff]
  %v44 = vld [vmem:[%s3 + $0x80] sm:$0xff]
  %v45 = vld [vmem:[%s3 + $0x88] sm:$0xff]
  %v46 = vld [vmem:[%s3 + $0x90] sm:$0xff]
  %v47 = vld [vmem:[%s4] sm:$0xff]
  %v48 = vld [vmem:[%s4 + $0x8] sm:$0xff]
  %v49 = vld [vmem:[%s4 + $0x10] sm:$0xff]
  %v50 = vld [vmem:[%s4 + $0x18] sm:$0xff]
  %v51 = vld [vmem:[%s4 + $0x20] sm:$0xff]
  %v52 = vld [vmem:[%s4 + $0x28] sm:$0xff]
  %v53 = vld [vmem:[%s4 + $0x30] sm:$0xff]
  %v54 = vld [vmem:[%s4 + $0x38] sm:$0xff]
  %v55 = vld [vmem:[%s4 + $0x40] sm:$0xff]
  %v56 = vld [vmem:[%s4 + $0x48] sm:$0xff]
  %v57 = vld [vmem:[%s4 + $0x50] sm:$0xff]
  %v58 = vld [vmem:[%s4 + $0x58] sm:$0xff]
  %v59 = vld [vmem:[%s4 + $0x60] sm:$0xff]
  %v60 = vld [vmem:[%s4 + $0x68] sm:$0xff]
  %v61 = vld [vmem:[%s4 + $0x70] sm:$0xff]
  %v62 = vld [vmem:[%s4 + $0x78] sm:$0xff]
  %v63 = vld [vmem:[%s4 + $0x80] sm:$0xff]
  %v64 = vld [vmem:[%s4 + $0x88] sm:$0xff]
  %v65 = vld [vmem:[%s4 + $0x90] sm:$0xff]
  %v66 = vld [vmem:[%s4 + $0x98] sm:$0xff]
  %v67 = vld [vmem:[%s4 + $0xa0] sm:$0xff]
  %v68 = vld [vmem:[%s4 + $0xa8] sm:$0xff]
  %v69 = vld [vmem:[%s4 + $0xb0] sm:$0xff]
  %v70 = vld [vmem:[%s4 + $0xb8] sm:$0xff]
  %v71 = vld [vmem:[%s5] sm:$0xff]
  %v72 = vld [vmem:[%s5 + $0x8] sm:$0xff]
  %v73 = vld [vmem:[%s5 + $0x10] sm:$0xff]
  %v74 = vld [vmem:[%s5 + $0x18] sm:$0xff]
  %v75 = vld [vmem:[%s5 + $0x20] sm:$0xff]
  %v76 = vld [vmem:[%s5 + $0x28] sm:$0xff]
  %v77 = vld [vmem:[%s5 + $0x30] sm:$0xff]
  %v78 = vld [vmem:[%s5 + $0x38] sm:$0xff]
  %v79 = vld [vmem:[%s5 + $0x40] sm:$0xff]
  %v80 = vld [vmem:[%s5 + $0x48] sm:$0xff]
  %v81 = vld [vmem:[%s5 + $0x50] sm:$0xf]
  %v82 = vld [vmem:[%s2] sm:$0xff]
  %v83 = vld [vmem:[%s2 + $0x8] sm:$0xff]
  %v84 = vld [vmem:[%s2 + $0x10] sm:$0xff]
  %v85 = vld [vmem:[%s2 + $0x18] sm:$0xff]
  %v86 = vld [vmem:[%s2 + $0x20] sm:$0xff]
  %v87 = vld [vmem:[%s2 + $0x28] sm:$0xff]
  %v88 = vld [vmem:[%s2 + $0x30] sm:$0xff]
  %v89 = vld [vmem:[%s2 + $0x38] sm:$0xff]
  %v90 = vld [vmem:[%s2 + $0x40] sm:$0xff]
  %v91 = vld [vmem:[%s2 + $0x48] sm:$0xff]
  %v92 = vld [vmem:[%s2 + $0x50] sm:$0xff]
  %v93 = vld [vmem:[%s2 + $0x58] sm:$0xff]
  %v94 = vld [vmem:[%s2 + $0x60] sm:$0xff]
  %v95 = vld [vmem:[%s2 + $0x68] sm:$0xff]
  %v96 = vld [vmem:[%s2 + $0x70] sm:$0xff]
  %v97 = vld [vmem:[%s2 + $0x78] sm:$0xff]
  %v98 = vld [vmem:[%s0] sm:$0xff]
  %v99 = vld [vmem:[%s0 + $0x8] sm:$0xff]
  %vm100 = vcmask 64512
  %v102 = vsel %vm100, %v98, 0
  %v105 = vsel %vm100, %v99, 0
  %107 = vmatpush.msra.mxu0 0.0
  %108 = vmatpush.msra.mxu0 0.0
  %109 = vmatpush.msra.mxu0 0.0
  %110 = vmatpush.msra.mxu0 0.0
  %111 = vmatpush.msra.mxu0 0.0
  %112 = vmatpush.msra.mxu0 0.0
  %113 = vmatpush.msra.mxu0 0.0
  %114 = vmatpush.msra.mxu0 0.0
  %115 = vmatpush.msra.mxu0 0.0
  %116 = vmatpush.msra.mxu0 0.0
  %117 = vmatpush.msra.mxu0 0.0
  %118 = vmatpush.msra.mxu0 0.0
  %119 = vmatpush.msra.mxu0 0.0
  %120 = vmatpush.msra.mxu0 0.0
  %121 = vmatpush.msra.mxu0 0.0
  %122 = vmatpush.msra.mxu0 %v28
  %123 = vmatmul.f32.gmra.mxu0 %v102
  %v124 = vpop.f32.mrf.mxu0
  %v125 = vadd.f32 0.0, %v124
  %126 = vmatmul.f32.gmra.mxu0 %v105
  %v127 = vpop.f32.mrf.mxu0
  %v128 = vadd.f32 0.0, %v127
  %129 = vdwg.mxu0
  %vm130 = vcmask 523264
  %v132 = vsel %vm130, %v125, 0
  %v135 = vsel %vm130, %v128, 0
  %137 = vmatpush.msra.mxu0 0.0
  %138 = vmatpush.msra.mxu0 0.0
  %139 = vmatpush.msra.mxu0 0.0
  %140 = vmatpush.msra.mxu0 0.0
  %141 = vmatpush.msra.mxu0 0.0
  %142 = vmatpush.msra.mxu0 0.0
  %143 = vmatpush.msra.mxu0 0.0
  %144 = vmatpush.msra.mxu0 0.0
  %145 = vmatpush.msra.mxu0 %v54
  %146 = vmatpush.msra.mxu0 %v53
  %147 = vmatpush.msra.mxu0 %v52
  %148 = vmatpush.msra.mxu0 %v51
  %149 = vmatpush.msra.mxu0 %v50
  %150 = vmatpush.msra.mxu0 %v49
  %151 = vmatpush.msra.mxu0 %v48
  %152 = vmatpush.msra.mxu0 %v47
  %153 = vmatmul.f32.gmra.mxu0 %v132
  %v154 = vpop.f32.mrf.mxu0
  %v155 = vadd.f32 0.0, %v154
  %156 = vmatmul.f32.gmra.mxu0 %v135
  %v157 = vpop.f32.mrf.mxu0
  %v158 = vadd.f32 0.0, %v157
  %159 = vdwg.mxu0
  %v161 = vsel %vm100, %v155, 0
  %v164 = vsel %vm100, %v158, 0
  %166 = vmatpush.msra.mxu0 0.0
  %167 = vmatpush.msra.mxu0 0.0
  %168 = vmatpush.msra.mxu0 0.0
  %169 = vmatpush.msra.mxu0 0.0
  %170 = vmatpush.msra.mxu0 0.0
  %171 = vmatpush.msra.mxu0 0.0
  %172 = vmatpush.msra.mxu0 0.0
  %173 = vmatpush.msra.mxu0 0.0
  %174 = vmatpush.msra.mxu0 0.0
  %175 = vmatpush.msra.mxu0 0.0
  %176 = vmatpush.msra.mxu0 0.0
  %177 = vmatpush.msra.mxu0 0.0
  %178 = vmatpush.msra.mxu0 0.0
  %179 = vmatpush.msra.mxu0 0.0
  %180 = vmatpush.msra.mxu0 0.0
  %181 = vmatpush.msra.mxu0 %v23
  %182 = vmatmul.f32.gmra.mxu0 %v161
  %v183 = vpop.f32.mrf.mxu0
  %v184 = vadd.f32 0.0, %v183
  %185 = vmatmul.f32.gmra.mxu0 %v164
  %v186 = vpop.f32.mrf.mxu0
  %v187 = vadd.f32 0.0, %v186
  %188 = vdwg.mxu0
  %v189 = vmul.f32 %v184, %v24
  %v190 = vmul.f32 %v187, %v25
  %vm191 = vcmask 130048
  %v193 = vsel %vm191, 1.0, 0
  %195 = vmatpush.msra.mxu0 0.0
  %196 = vmatpush.msra.mxu0 0.0
  %197 = vmatpush.msra.mxu0 0.0
  %198 = vmatpush.msra.mxu0 0.0
  %199 = vmatpush.msra.mxu0 0.0
  %200 = vmatpush.msra.mxu0 0.0
  %201 = vmatpush.msra.mxu0 0.0
  %202 = vmatpush.msra.mxu0 0.0
  %203 = vmatpush.msra.mxu0 0.0
  %204 = vmatpush.msra.mxu0 0.0
  %205 = vmatpush.msra.mxu0 0.0
  %206 = vmatpush.msra.mxu0 0.0
  %207 = vmatpush.msra.mxu0 0.0
  %208 = vmatpush.msra.mxu0 0.0
  %209 = vmatpush.msra.mxu0 %v190
  %210 = vmatpush.msra.mxu0 %v189
  %211 = vmatmul.f32.gmra.mxu0 %v193
  %v212 = vpop.f32.mrf.mxu0
  %v213 = vadd.f32 0.0, %v212
  %214 = vmatmul.f32.gmra.mxu0 %v193
  %v215 = vpop.f32.mrf.mxu0
  %v216 = vadd.f32 0.0, %v215
  %217 = vdwg.mxu0
  %218 = vrot.lane.b32.xlu0 %v155, 120
  %v219 = vpop.permute.xlu0 %218
  %220 = vrot.lane.b32.xlu0 %v158, 120
  %v221 = vpop.permute.xlu0 %220
  %v222 = vsel %vm100, %v219, 0
  %v224 = vsel %vm100, %v221, 0
  %226 = vmatpush.msra.mxu0 0.0
  %227 = vmatpush.msra.mxu0 0.0
  %228 = vmatpush.msra.mxu0 0.0
  %229 = vmatpush.msra.mxu0 0.0
  %230 = vmatpush.msra.mxu0 0.0
  %231 = vmatpush.msra.mxu0 0.0
  %232 = vmatpush.msra.mxu0 0.0
  %233 = vmatpush.msra.mxu0 0.0
  %234 = vmatpush.msra.mxu0 0.0
  %235 = vmatpush.msra.mxu0 0.0
  %236 = vmatpush.msra.mxu0 0.0
  %237 = vmatpush.msra.mxu0 0.0
  %238 = vmatpush.msra.mxu0 0.0
  %239 = vmatpush.msra.mxu0 0.0
  %240 = vmatpush.msra.mxu0 0.0
  %241 = vmatpush.msra.mxu0 %v23
  %242 = vmatmul.f32.gmra.mxu0 %v222
  %v243 = vpop.f32.mrf.mxu0
  %v244 = vadd.f32 %v213, %v243
  %245 = vmatmul.f32.gmra.mxu0 %v224
  %v246 = vpop.f32.mrf.mxu0
  %v247 = vadd.f32 %v216, %v246
  %248 = vdwg.mxu0
  %v249 = vmul.f32 %v244, 0.2
  %v250 = vmul.f32 %v247, 0.2
  %v251 = vmax.f32 %v244, %v249
  %v252 = vmax.f32 %v247, %v250
  %v253 = vadd.f32 %v251, %v26
  %v254 = vadd.f32 %v252, %v27
  %255 = vmax.xlane.f32.xlu0 %v253
  %v256 = vpop.xlane.xlu0 %255
  %257 = vmax.xlane.f32.xlu0 %v254
  %v258 = vpop.xlane.xlu0 %257
  %v259 = vsub.f32 %v253, %v256
  %v260 = vsub.f32 %v254, %v258
  %v261 = vmul.f32 %v259, 1.442695
  %v262 = vpow.pop %v261
  %v263 = vmul.f32 %v260, 1.442695
  %v264 = vpow.pop %v263
  %265 = vmatpush.msra.mxu0 %v97
  %266 = vmatpush.msra.mxu0 %v96
  %267 = vmatpush.msra.mxu0 %v95
  %268 = vmatpush.msra.mxu0 %v94
  %269 = vmatpush.msra.mxu0 %v93
  %270 = vmatpush.msra.mxu0 %v92
  %271 = vmatpush.msra.mxu0 %v91
  %272 = vmatpush.msra.mxu0 %v90
  %273 = vmatpush.msra.mxu0 %v89
  %274 = vmatpush.msra.mxu0 %v88
  %275 = vmatpush.msra.mxu0 %v87
  %276 = vmatpush.msra.mxu0 %v86
  %277 = vmatpush.msra.mxu0 %v85
  %278 = vmatpush.msra.mxu0 %v84
  %279 = vmatpush.msra.mxu0 %v83
  %280 = vmatpush.msra.mxu0 %v82
  %281 = vmatmul.f32.gmra.mxu0 %v262
  %v282 = vpop.f32.mrf.mxu0
  %v283 = vadd.f32 0.0, %v282
  %284 = vmatmul.f32.gmra.mxu0 %v264
  %v285 = vpop.f32.mrf.mxu0
  %v286 = vadd.f32 0.0, %v285
  %287 = vdwg.mxu0
  %v288 = vrcp.pop %v283
  %v289 = vrcp.pop %v286
  %v290 = vmul.f32 %v283, %v288
  %v291 = vmul.f32 %v286, %v289
  %v292 = vsub.f32 2.0, %v290
  %v293 = vsub.f32 2.0, %v291
  %v294 = vmul.f32 %v288, %v292
  %v295 = vmul.f32 %v289, %v293
  %v297 = vsel %vm100, %v294, 0
  %v300 = vsel %vm100, %v295, 0
  %302 = vmatpush.msra.mxu0 0.0
  %303 = vmatpush.msra.mxu0 0.0
  %304 = vmatpush.msra.mxu0 0.0
  %305 = vmatpush.msra.mxu0 0.0
  %306 = vmatpush.msra.mxu0 0.0
  %307 = vmatpush.msra.mxu0 0.0
  %308 = vmatpush.msra.mxu0 0.0
  %309 = vmatpush.msra.mxu0 0.0
  %310 = vmatpush.msra.mxu0 0.0
  %311 = vmatpush.msra.mxu0 0.0
  %312 = vmatpush.msra.mxu0 0.0
  %313 = vmatpush.msra.mxu0 0.0
  %314 = vmatpush.msra.mxu0 0.0
  %315 = vmatpush.msra.mxu0 0.0
  %316 = vmatpush.msra.mxu0 0.0
  %317 = vmatpush.msra.mxu0 %v23
  %318 = vmatmul.f32.gmra.mxu0 %v297
  %v319 = vpop.f32.mrf.mxu0
  %v320 = vadd.f32 0.0, %v319
  %321 = vmatmul.f32.gmra.mxu0 %v300
  %v322 = vpop.f32.mrf.mxu0
  %v323 = vadd.f32 0.0, %v322
  %324 = vdwg.mxu0
  %v325 = vmul.f32 %v262, %v320
  %v326 = vmul.f32 %v264, %v323
  %v328 = vsel %vm191, %v55, 0
  %v331 = vsel %vm191, %v56, 0
  %v334 = vsel %vm191, %v57, 0
  %v337 = vsel %vm191, %v58, 0
  %v340 = vsel %vm191, %v59, 0
  %v343 = vsel %vm191, %v60, 0
  %v346 = vsel %vm191, %v61, 0
  %v349 = vsel %vm191, %v62, 0
  %v352 = vsel %vm191, %v63, 0
  %v355 = vsel %vm191, %v64, 0
  %v358 = vsel %vm191, %v65, 0
  %v361 = vsel %vm191, %v66, 0
  %v364 = vsel %vm191, %v67, 0
  %v367 = vsel %vm191, %v68, 0
  %v370 = vsel %vm191, %v69, 0
  %v373 = vsel %vm191, %v70, 0
  %375 = vmatpush.msra.mxu0 0.0
  %376 = vmatpush.msra.mxu0 0.0
  %377 = vmatpush.msra.mxu0 0.0
  %378 = vmatpush.msra.mxu0 0.0
  %379 = vmatpush.msra.mxu0 0.0
  %380 = vmatpush.msra.mxu0 0.0
  %381 = vmatpush.msra.mxu0 0.0
  %382 = vmatpush.msra.mxu0 0.0
  %383 = vmatpush.msra.mxu0 0.0
  %384 = vmatpush.msra.mxu0 0.0
  %385 = vmatpush.msra.mxu0 0.0
  %386 = vmatpush.msra.mxu0 0.0
  %387 = vmatpush.msra.mxu0 0.0
  %388 = vmatpush.msra.mxu0 0.0
  %389 = vmatpush.msra.mxu0 %v128
  %390 = vmatpush.msra.mxu0 %v125
  %391 = vmatmul.f32.gmra.mxu0 %v328
  %v392 = vpop.f32.mrf.mxu0
  %v393 = vadd.f32 0.0, %v392
  %394 = vmatmul.f32.gmra.mxu0 %v331
  %v395 = vpop.f32.mrf.mxu0
  %v396 = vadd.f32 0.0, %v395
  %397 = vmatmul.f32.gmra.mxu0 %v334
  %v398 = vpop.f32.mrf.mxu0
  %v399 = vadd.f32 0.0, %v398
  %400 = vmatmul.f32.gmra.mxu0 %v337
  %v401 = vpop.f32.mrf.mxu0
  %v402 = vadd.f32 0.0, %v401
  %403 = vmatmul.f32.gmra.mxu0 %v340
  %v404 = vpop.f32.mrf.mxu0
  %v405 = vadd.f32 0.0, %v404
  %406 = vmatmul.f32.gmra.mxu0 %v343
  %v407 = vpop.f32.mrf.mxu0
  %v408 = vadd.f32 0.0, %v407
  %409 = vmatmul.f32.gmra.mxu0 %v346
  %v410 = vpop.f32.mrf.mxu0
  %v411 = vadd.f32 0.0, %v410
  %412 = vmatmul.f32.gmra.mxu0 %v349
  %v413 = vpop.f32.mrf.mxu0
  %v414 = vadd.f32 0.0, %v413
  %415 = vmatmul.f32.gmra.mxu0 %v352
  %v416 = vpop.f32.mrf.mxu0
  %v417 = vadd.f32 0.0, %v416
  %418 = vmatmul.f32.gmra.mxu0 %v355
  %v419 = vpop.f32.mrf.mxu0
  %v420 = vadd.f32 0.0, %v419
  %421 = vmatmul.f32.gmra.mxu0 %v358
  %v422 = vpop.f32.mrf.mxu0
  %v423 = vadd.f32 0.0, %v422
  %424 = vmatmul.f32.gmra.mxu0 %v361
  %v425 = vpop.f32.mrf.mxu0
  %v426 = vadd.f32 0.0, %v425
  %427 = vmatmul.f32.gmra.mxu0 %v364
  %v428 = vpop.f32.mrf.mxu0
  %v429 = vadd.f32 0.0, %v428
  %430 = vmatmul.f32.gmra.mxu0 %v367
  %v431 = vpop.f32.mrf.mxu0
  %v432 = vadd.f32 0.0, %v431
  %433 = vmatmul.f32.gmra.mxu0 %v370
  %v434 = vpop.f32.mrf.mxu0
  %v435 = vadd.f32 0.0, %v434
  %436 = vmatmul.f32.gmra.mxu0 %v373
  %v437 = vpop.f32.mrf.mxu0
  %v438 = vadd.f32 0.0, %v437
  %439 = vdwg.mxu0
  %v440 = vmul.f32 %v393, %v29
  %v441 = vmul.f32 %v396, %v30
  %v442 = vmul.f32 %v399, %v31
  %v443 = vmul.f32 %v402, %v32
  %v444 = vmul.f32 %v405, %v33
  %v445 = vmul.f32 %v408, %v34
  %v446 = vmul.f32 %v411, %v35
  %v447 = vmul.f32 %v414, %v36
  %v448 = vmul.f32 %v417, %v37
  %v449 = vmul.f32 %v420, %v38
  %v450 = vmul.f32 %v423, %v39
  %v451 = vmul.f32 %v426, %v40
  %v452 = vmul.f32 %v429, %v41
  %v453 = vmul.f32 %v432, %v42
  %v454 = vmul.f32 %v435, %v43
  %v455 = vmul.f32 %v438, %v44
  %456 = vmatpush.msra.mxu0 %v455
  %457 = vmatpush.msra.mxu0 %v454
  %458 = vmatpush.msra.mxu0 %v453
  %459 = vmatpush.msra.mxu0 %v452
  %460 = vmatpush.msra.mxu0 %v451
  %461 = vmatpush.msra.mxu0 %v450
  %462 = vmatpush.msra.mxu0 %v449
  %463 = vmatpush.msra.mxu0 %v448
  %464 = vmatpush.msra.mxu0 %v447
  %465 = vmatpush.msra.mxu0 %v446
  %466 = vmatpush.msra.mxu0 %v445
  %467 = vmatpush.msra.mxu0 %v444
  %468 = vmatpush.msra.mxu0 %v443
  %469 = vmatpush.msra.mxu0 %v442
  %470 = vmatpush.msra.mxu0 %v441
  %471 = vmatpush.msra.mxu0 %v440
  %472 = vmatmul.f32.gmra.mxu0 %v325
  %v473 = vpop.f32.mrf.mxu0
  %v474 = vadd.f32 %v45, %v473
  %475 = vmatmul.f32.gmra.mxu0 %v326
  %v476 = vpop.f32.mrf.mxu0
  %v477 = vadd.f32 %v46, %v476
  %478 = vdwg.mxu0
  %vm479 = vcmp.gt.f32.partialorder %v474, 0.0
  %vm480 = vcmp.gt.f32.partialorder %v477, 0.0
  %v481 = vmul.f32 %v474, 1.442695
  %v482 = vpow.pop %v481
  %v483 = vmul.f32 %v477, 1.442695
  %v484 = vpow.pop %v483
  %v485 = vsub.f32 %v482, 1.0
  %v486 = vsub.f32 %v484, 1.0
  %v487 = vsel %vm479, %v474, %v485
  %v488 = vsel %vm480, %v477, %v486
  %v490 = vsel %vm130, %v487, 0
  %v493 = vsel %vm130, %v488, 0
  %495 = vmatpush.msra.mxu0 0.0
  %496 = vmatpush.msra.mxu0 0.0
  %497 = vmatpush.msra.mxu0 0.0
  %498 = vmatpush.msra.mxu0 0.0
  %499 = vmatpush.msra.mxu0 0.0
  %500 = vmatpush.msra.mxu0 0.0
  %501 = vmatpush.msra.mxu0 0.0
  %502 = vmatpush.msra.mxu0 0.0
  %503 = vmatpush.msra.mxu0 %v78
  %504 = vmatpush.msra.mxu0 %v77
  %505 = vmatpush.msra.mxu0 %v76
  %506 = vmatpush.msra.mxu0 %v75
  %507 = vmatpush.msra.mxu0 %v74
  %508 = vmatpush.msra.mxu0 %v73
  %509 = vmatpush.msra.mxu0 %v72
  %510 = vmatpush.msra.mxu0 %v71
  %511 = vmatmul.f32.gmra.mxu0 %v490
  %v512 = vpop.f32.mrf.mxu0
  %v513 = vadd.f32 0.0, %v512
  %514 = vmatmul.f32.gmra.mxu0 %v493
  %v515 = vpop.f32.mrf.mxu0
  %v516 = vadd.f32 0.0, %v515
  %517 = vdwg.mxu0
  %vm518 = vcmask 31744
  %v520 = vsel %vm518, %v513, 0
  %v523 = vsel %vm518, %v516, 0
  %vm525 = vcmask 1043456
  %v527 = vsel %vm525, %v79, 0
  %529 = vmatpush.msra.mxu0 0.0
  %530 = vmatpush.msra.mxu0 0.0
  %531 = vmatpush.msra.mxu0 0.0
  %532 = vmatpush.msra.mxu0 0.0
  %533 = vmatpush.msra.mxu0 0.0
  %534 = vmatpush.msra.mxu0 0.0
  %535 = vmatpush.msra.mxu0 0.0
  %536 = vmatpush.msra.mxu0 0.0
  %537 = vmatpush.msra.mxu0 0.0
  %538 = vmatpush.msra.mxu0 0.0
  %539 = vmatpush.msra.mxu0 0.0
  %540 = vmatpush.msra.mxu0 0.0
  %541 = vmatpush.msra.mxu0 0.0
  %542 = vmatpush.msra.mxu0 0.0
  %543 = vmatpush.msra.mxu0 0.0
  %544 = vmatpush.msra.mxu0 %v527
  %545 = vmatmul.f32.gmra.mxu0 %v520
  %v546 = vpop.f32.mrf.mxu0
  %v547 = vadd.f32 0.0, %v546
  %548 = vmatmul.f32.gmra.mxu0 %v523
  %v549 = vpop.f32.mrf.mxu0
  %v550 = vadd.f32 0.0, %v549
  %551 = vdwg.mxu0
  %553 = vset.pattern.permute.xlu0 0
  %554 = vperm.xlu0 %553, %v547
  %v555 = vpop.permute.xlu0 %554
  %558 = vset.pattern.permute.xlu0 0
  %559 = vperm.xlu0 %558, %v550
  %v560 = vpop.permute.xlu0 %559
  %v562 = vmul.f32 %v555, %v55
  %v563 = vmul.f32 %v560, %v56
  %564 = vmatpush.msra.mxu0 0.0
  %565 = vmatpush.msra.mxu0 0.0
  %566 = vmatpush.msra.mxu0 0.0
  %567 = vmatpush.msra.mxu0 0.0
  %568 = vmatpush.msra.mxu0 0.0
  %569 = vmatpush.msra.mxu0 0.0
  %570 = vmatpush.msra.mxu0 0.0
  %571 = vmatpush.msra.mxu0 0.0
  %572 = vmatpush.msra.mxu0 0.0
  %573 = vmatpush.msra.mxu0 0.0
  %574 = vmatpush.msra.mxu0 0.0
  %575 = vmatpush.msra.mxu0 0.0
  %576 = vmatpush.msra.mxu0 0.0
  %577 = vmatpush.msra.mxu0 0.0
  %578 = vmatpush.msra.mxu0 %v563
  %579 = vmatpush.msra.mxu0 %v562
  %580 = vmatmul.f32.gmra.mxu0 %v193
  %v581 = vpop.f32.mrf.mxu0
  %v582 = vadd.f32 0.0, %v581
  %583 = vmatmul.f32.gmra.mxu0 %v193
  %v584 = vpop.f32.mrf.mxu0
  %v585 = vadd.f32 0.0, %v584
  %586 = vdwg.mxu0
  %587 = vset.pattern.permute.xlu0 1
  %588 = vperm.xlu0 %587, %v547
  %v589 = vpop.permute.xlu0 %588
  %591 = vset.pattern.permute.xlu0 1
  %592 = vperm.xlu0 %591, %v550
  %v593 = vpop.permute.xlu0 %592
  %v595 = vadd.f32 %v589, %v582
  %v596 = vadd.f32 %v593, %v585
  %v597 = vmul.f32 %v595, 0.2
  %v598 = vmul.f32 %v596, 0.2
  %v599 = vmax.f32 %v595, %v597
  %v600 = vmax.f32 %v596, %v598
  %v601 = vadd.f32 %v599, %v26
  %v602 = vadd.f32 %v600, %v27
  %v603 = vsel %vm191, %v601, -inf
  %604 = vmax.xlane.f32.xlu0 %v603
  %v605 = vpop.xlane.xlu0 %604
  %v606 = vsel %vm191, %v602, -inf
  %607 = vmax.xlane.f32.xlu0 %v606
  %v608 = vpop.xlane.xlu0 %607
  %v609 = vsub.f32 %v601, %v605
  %v610 = vsub.f32 %v602, %v608
  %v611 = vmul.f32 %v609, 1.442695
  %v612 = vpow.pop %v611
  %v613 = vmul.f32 %v610, 1.442695
  %v614 = vpow.pop %v613
  %v615 = vsel %vm191, %v612, 0.0
  %616 = vadd.xlane.f32.xlu0 %v615
  %v617 = vpop.xlane.xlu0 %616
  %v618 = vsel %vm191, %v614, 0.0
  %619 = vadd.xlane.f32.xlu0 %v618
  %v620 = vpop.xlane.xlu0 %619
  %v621 = vrcp.pop %v617
  %v622 = vrcp.pop %v620
  %v623 = vmul.f32 %v617, %v621
  %v624 = vmul.f32 %v620, %v622
  %v625 = vsub.f32 2.0, %v623
  %v626 = vsub.f32 2.0, %v624
  %v627 = vmul.f32 %v621, %v625
  %v628 = vmul.f32 %v622, %v626
  %v629 = vmul.f32 %v612, %v627
  %v630 = vmul.f32 %v614, %v628
  %v633 = vrot.slane %v79, 4
  %v634 = vrot.slane %v80, 4
  %v635 = vsel %vm525, %v633, %v634
  %v636 = vrot.slane %v81, 4
  %v637 = vsel %vm525, %v634, %v636
  %v641 = vsel %vm191, %v629, 0
  %v644 = vsel %vm191, %v630, 0
  %646 = vmatpush.msra.mxu0 0.0
  %647 = vmatpush.msra.mxu0 0.0
  %648 = vmatpush.msra.mxu0 0.0
  %649 = vmatpush.msra.mxu0 0.0
  %650 = vmatpush.msra.mxu0 0.0
  %651 = vmatpush.msra.mxu0 0.0
  %652 = vmatpush.msra.mxu0 0.0
  %653 = vmatpush.msra.mxu0 0.0
  %654 = vmatpush.msra.mxu0 0.0
  %655 = vmatpush.msra.mxu0 0.0
  %656 = vmatpush.msra.mxu0 0.0
  %657 = vmatpush.msra.mxu0 0.0
  %658 = vmatpush.msra.mxu0 0.0
  %659 = vmatpush.msra.mxu0 0.0
  %660 = vmatpush.msra.mxu0 %v516
  %661 = vmatpush.msra.mxu0 %v513
  %662 = vmatmul.f32.gmra.mxu0 %v641
  %v663 = vpop.f32.mrf.mxu0
  %v664 = vadd.f32 %v635, %v663
  %665 = vmatmul.f32.gmra.mxu0 %v644
  %v666 = vpop.f32.mrf.mxu0
  %v667 = vadd.f32 %v637, %v666
  %668 = vdwg.mxu0
  %v669 = vsel %vm518, %v664, -inf
  %670 = vmax.xlane.f32.xlu0 %v669
  %v671 = vpop.xlane.xlu0 %670
  %v672 = vsel %vm518, %v667, -inf
  %673 = vmax.xlane.f32.xlu0 %v672
  %v674 = vpop.xlane.xlu0 %673
  %v675 = vsub.f32 %v664, %v671
  %v676 = vsub.f32 %v667, %v674
  %v677 = vmul.f32 %v675, 1.442695
  %v678 = vpow.pop %v677
  %v679 = vmul.f32 %v676, 1.442695
  %v680 = vpow.pop %v679
  %v681 = vsel %vm518, %v678, 0.0
  %682 = vadd.xlane.f32.xlu0 %v681
  %v683 = vpop.xlane.xlu0 %682
  %v684 = vsel %vm518, %v680, 0.0
  %685 = vadd.xlane.f32.xlu0 %v684
  %v686 = vpop.xlane.xlu0 %685
  %v687 = vlog2.pop %v683
  %v688 = vmul.f32 %v687, 0.6931472
  %v689 = vlog2.pop %v686
  %v690 = vmul.f32 %v689, 0.6931472
  %v691 = vsub.f32 %v675, %v688
  %v692 = vsub.f32 %v676, %v690
  %695 = vrot.lane.b32.xlu0 %v691, 4
  %v696 = vpop.permute.xlu0 %695
  %697 = vrot.lane.b32.xlu0 %v692, 4
  %v698 = vpop.permute.xlu0 %697
  %v701 = vsel %vm518, %v664, %v696
  %v702 = vsel %vm518, %v667, %v698
  %703 = vst.msk [vmem:[%s6] sm:$0xff] %vm100, %v701
  %704 = vst.msk [vmem:[%s6 + $0x8] sm:$0xff] %vm100, %v702
  // Predicated region
  $region26: #{tpu_custom_call.1} parent=0 // pred_check
    _
  $region27: #{tpu_custom_call.1} parent=0 // pred_check_branch
    %706 = sbr.rel (0) target = $region29
  $region28: #{tpu_custom_call.1} parent=0 // pred_region
    _
  $region29: #{tpu_custom_call.1} parent=0 // pred_fallthru
    _
  // Predicated region
  $region30: #{tpu_custom_call.1} parent=0 // pred_check
    _
  $region31: #{tpu_custom_call.1} parent=0 // pred_check_branch
    %708 = sbr.rel (0) target = $region33
  $region32: #{tpu_custom_call.1} parent=0 // pred_region
    _
  $region33: #{tpu_custom_call.1} parent=0 // pred_fallthru
    _

</llo_original>
